<compile_context>
chip_gen: v7x
topology: tpu7x:2x2x1
jax: 0.10.0
libtpu: 0.0.40
codegen_flags: <defaults>
</compile_context>

<pallas_src>
import math
from functools import partial

import jax
import jax.numpy as jnp
from jax import lax
from jax.experimental import pallas as pl
from jax.experimental.pallas import tpu as pltpu


def _round_up(n: int, m: int) -> int:
    return ((n + m - 1) // m) * m


def _cdiv(a: int, b: int) -> int:
    return -(-a // b)


def actor_critic_kernel(x_ref, w1_ref, b1_ref, w2_ref, b2_ref, wm_ref, bm_ref,
                        mean_ref, *, precision):
    # Shared MLP trunk: Linear -> Tanh -> Linear -> Tanh, fully fused on-chip.
    # MXU operands use the weight dtype (bf16 fast path / f32 parity path); the
    # cast happens on-chip so x's HBM stream stays at its native dtype.
    cd = w1_ref.dtype
    h = jnp.dot(x_ref[...].astype(cd), w1_ref[...],
                preferred_element_type=jnp.float32, precision=precision)
    h = jnp.tanh(h + b1_ref[...])                       # f32 VPU/EUP ops
    h = jnp.dot(h.astype(cd), w2_ref[...],
                preferred_element_type=jnp.float32, precision=precision)
    h = jnp.tanh(h + b2_ref[...])
    # Actor mean head -> narrow (tm, act_dim) output block; no padded slab, no
    # wrapper-side slice over padding.
    mean_ref[...] = (
        jnp.dot(h.astype(cd), wm_ref[...],
                preferred_element_type=jnp.float32, precision=precision)
        + bm_ref[...]
    )


def prepare_params(raw_params, use_bf16_matmul=True):
    """One-time (load-time) parameter prep: reshape biases to (1, out) and cast
    weights to the MXU operand dtype.  Hoisted out of the per-call jitted path."""
    w1, b1, w2, b2, wm, bm = raw_params
    wdt = jnp.bfloat16 if use_bf16_matmul else jnp.float32
    # Biases / accumulation / tanh stay f32 (v5e VPU/EUP have no bf16).
    return (w1.astype(wdt), b1.reshape(1, -1).astype(jnp.float32),
            w2.astype(wdt), b2.reshape(1, -1).astype(jnp.float32),
            wm.astype(wdt), bm.reshape(1, -1).astype(jnp.float32))


@partial(jax.jit, static_argnames=("block_batch", "highest_precision"))
def actor_critic_forward(x, params, block_batch=2048, highest_precision=False):
    """Fused forward pass. Returns (mean, None, None) like the PyTorch module.

    `params` must come from prepare_params() (weights already (in, out), biases (1, out)).
    """
    w1, b1, w2, b2, wm, bm = params
    B, obs_dim = x.shape
    hidden_dim = w1.shape[1]
    act_dim = wm.shape[1]

    # HIGHEST only makes sense (and only pays its 3-6x MXU-pass cost) on the
    # explicit f32-parity path; the default path uses single-pass DEFAULT precision.
    precision = (lax.Precision.HIGHEST
                 if (highest_precision and w1.dtype == jnp.float32) else None)

    # ---- balanced batch tiling: derive tm from the tile count, not vice versa ----
    num_tiles = max(1, _cdiv(B, block_batch))
    if B >= 1024:
        # v7x has 2 TensorCores/chip: give the "parallel" batch axis >=2 steps to shard.
        num_tiles = max(num_tiles, 2)
    tm = _round_up(_cdiv(B, num_tiles), 8)      # sublane-aligned rows per tile
    B_p = num_tiles * tm                        # padded tail < 8*num_tiles rows
    xp = x if B_p == B else jnp.pad(x, ((0, B_p - B), (0, 0)))

    mean_padded = pl.pallas_call(
        partial(actor_critic_kernel, precision=precision),
        out_shape=jax.ShapeDtypeStruct((B_p, act_dim), jnp.float32),
        grid=(num_tiles,),
        in_specs=[
            # x / mean stream one row-tile per grid step; last dims equal the full
            # array dims, so no 128-lane padding is required.
            pl.BlockSpec((tm, obs_dim), lambda i: (i, 0)),
            # Parameters: constant index_maps -> DMA'd once, VMEM-resident
            # across all grid steps (~25 KiB f32 / ~13 KiB bf16 total).
            pl.BlockSpec((obs_dim, hidden_dim), lambda i: (0, 0)),
            pl.BlockSpec((1, hidden_dim), lambda i: (0, 0)),
            pl.BlockSpec((hidden_dim, hidden_dim), lambda i: (0, 0)),
            pl.BlockSpec((1, hidden_dim), lambda i: (0, 0)),
            pl.BlockSpec((hidden_dim, act_dim), lambda i: (0, 0)),
            pl.BlockSpec((1, act_dim), lambda i: (0, 0)),
        ],
        out_specs=pl.BlockSpec((tm, act_dim), lambda i: (i, 0)),
        compiler_params=pltpu.CompilerParams(
            # Batch axis is embarrassingly parallel -> v7x megacore sharding.
            dimension_semantics=("parallel",),
        ),
    )(xp, w1, b1, w2, b2, wm, bm)

    mean = mean_padded if B_p == B else mean_padded[:B]
    return mean, None, None


def init_linear(key, in_features, out_features):
    """Deterministic init mimicking torch.nn.Linear default (U[-1/sqrt(in), 1/sqrt(in)]).
    Weight is returned already transposed to (in, out) for the kernel layout."""
    kw, kb = jax.random.split(key)
    bound = 1.0 / math.sqrt(in_features)
    w = jax.random.uniform(kw, (in_features, out_features), jnp.float32,
                           minval=-bound, maxval=bound)
    b = jax.random.uniform(kb, (out_features,), jnp.float32,
                           minval=-bound, maxval=bound)
    return w, b


if __name__ == "__main__":
    # Small shapes consistent with the module: obs_dim=32, hidden_dim=64, action_dim=4.
    batch = 8
    obs_dim = 32
    hidden_dim = 64
    action_dim = 4  # np.prod(action_space.shape)

    root = jax.random.PRNGKey(0)
    k_x, k1, k2, k3 = jax.random.split(root, 4)

    x = jax.random.normal(k_x, (batch, obs_dim), jnp.float32)

    w1, b1 = init_linear(k1, obs_dim, hidden_dim)     # shared_layer[0]
    w2, b2 = init_linear(k2, hidden_dim, hidden_dim)  # shared_layer[2]
    wm, bm = init_linear(k3, hidden_dim, action_dim)  # fc_mean
    # fc_logstd / critic / action_scale / action_bias are declared in __init__ but
    # unused by forward(); forward() returns (mean, None, None).
    # TODO(synk): if a caller ever needs logstd/value, pack them into the same
    # (tm, 4+4+1) output block -- the MXU/EUP have headroom at these shapes.
    raw_params = (w1, b1, w2, b2, wm, bm)

    # Pure-JAX f32 reference (HIGHEST precision).
    def ref_forward(x, raw):
        w1, b1, w2, b2, wm, bm = raw
        h = jnp.tanh(jnp.dot(x, w1, precision=lax.Precision.HIGHEST) + b1)
        h = jnp.tanh(jnp.dot(h, w2, precision=lax.Precision.HIGHEST) + b2)
        return jnp.dot(h, wm, precision=lax.Precision.HIGHEST) + bm

    mean_ref = ref_forward(x, raw_params)

    # Fast default path: bf16 MXU operands, f32 accumulate/bias/tanh, DEFAULT precision.
    params_fast = prepare_params(raw_params, use_bf16_matmul=True)
    mean_fast, logstd, value = actor_critic_forward(x, params_fast)
    jax.block_until_ready(mean_fast)
    assert mean_fast.shape == (batch, action_dim)
    assert logstd is None and value is None
    assert jnp.allclose(mean_fast, mean_ref, atol=3e-2, rtol=3e-2)

    # Strict f32 parity path (HIGHEST only here, behind the flag).
    params_f32 = prepare_params(raw_params, use_bf16_matmul=False)
    mean_f32, _, _ = actor_critic_forward(x, params_f32, highest_precision=True)
    jax.block_until_ready(mean_f32)
    assert mean_f32.shape == (batch, action_dim)
    assert jnp.allclose(mean_f32, mean_ref, atol=1e-5, rtol=1e-5)

    print("KERNEL_OK")
</pallas_src>

<mosaic_0001>
module attributes {stable_mosaic.version = 11 : i64} {
  func.func @actor_critic_kernel(%arg0: i32, %arg1: memref<8x32xf32, #tpu.memory_space<vmem>>, %arg2: memref<32x64xbf16, #tpu.memory_space<vmem>>, %arg3: memref<1x64xf32, #tpu.memory_space<vmem>>, %arg4: memref<64x64xbf16, #tpu.memory_space<vmem>>, %arg5: memref<1x64xf32, #tpu.memory_space<vmem>>, %arg6: memref<64x4xbf16, #tpu.memory_space<vmem>>, %arg7: memref<1x4xf32, #tpu.memory_space<vmem>>, %arg8: memref<8x4xf32, #tpu.memory_space<vmem>>) attributes {dimension_semantics = [#tpu.dimension_semantics<parallel>], iteration_bounds = array<i64: 1>, scalar_prefetch = 0 : i64, scratch_operands = 0 : i64, tpu.core_type = #tpu.core_type<tc>, window_params = [{transform_indices = @transform_0, window_bounds = array<i64: 8, 32>}, {pipeline_mode = #tpu.pipeline_mode<synchronous>, transform_indices = @transform_1, window_bounds = array<i64: 32, 64>}, {pipeline_mode = #tpu.pipeline_mode<synchronous>, transform_indices = @transform_2, window_bounds = array<i64: 1, 64>}, {pipeline_mode = #tpu.pipeline_mode<synchronous>, transform_indices = @transform_3, window_bounds = array<i64: 64, 64>}, {pipeline_mode = #tpu.pipeline_mode<synchronous>, transform_indices = @transform_4, window_bounds = array<i64: 1, 64>}, {pipeline_mode = #tpu.pipeline_mode<synchronous>, transform_indices = @transform_5, window_bounds = array<i64: 64, 4>}, {pipeline_mode = #tpu.pipeline_mode<synchronous>, transform_indices = @transform_6, window_bounds = array<i64: 1, 4>}, {transform_indices = @transform_7, window_bounds = array<i64: 8, 4>}]} {
    %c0 = arith.constant 0 : index
    %c0_0 = arith.constant 0 : index
    %0 = vector.load %arg1[%c0, %c0_0] : memref<8x32xf32, #tpu.memory_space<vmem>>, vector<8x32xf32>
    %1 = arith.truncf %0 : vector<8x32xf32> to vector<8x32xbf16>
    %c0_1 = arith.constant 0 : index
    %c0_2 = arith.constant 0 : index
    %2 = vector.load %arg2[%c0_1, %c0_2] : memref<32x64xbf16, #tpu.memory_space<vmem>>, vector<32x64xbf16>
    %cst = arith.constant dense<0.000000e+00> : vector<8x64xf32>
    %3 = tpu.matmul %1, %2, %cst {dimension_numbers = #tpu.dot_dimension_numbers<[1], [0], [0], [1], [0, 0, 1, 1], [], []>} : vector<8x32xbf16>, vector<32x64xbf16>, vector<8x64xf32> -> vector<8x64xf32>
    %c0_3 = arith.constant 0 : index
    %c0_4 = arith.constant 0 : index
    %4 = vector.load %arg3[%c0_3, %c0_4] : memref<1x64xf32, #tpu.memory_space<vmem>>, vector<1x64xf32>
    %5 = vector.broadcast %4 : vector<1x64xf32> to vector<8x64xf32>
    %6 = arith.addf %3, %5 : vector<8x64xf32>
    %7 = math.tanh %6 : vector<8x64xf32>
    %8 = arith.truncf %7 : vector<8x64xf32> to vector<8x64xbf16>
    %c0_5 = arith.constant 0 : index
    %c0_6 = arith.constant 0 : index
    %9 = vector.load %arg4[%c0_5, %c0_6] : memref<64x64xbf16, #tpu.memory_space<vmem>>, vector<64x64xbf16>
    %cst_7 = arith.constant dense<0.000000e+00> : vector<8x64xf32>
    %10 = tpu.matmul %8, %9, %cst_7 {dimension_numbers = #tpu.dot_dimension_numbers<[1], [0], [0], [1], [0, 0, 1, 1], [], []>} : vector<8x64xbf16>, vector<64x64xbf16>, vector<8x64xf32> -> vector<8x64xf32>
    %c0_8 = arith.constant 0 : index
    %c0_9 = arith.constant 0 : index
    %11 = vector.load %arg5[%c0_8, %c0_9] : memref<1x64xf32, #tpu.memory_space<vmem>>, vector<1x64xf32>
    %12 = vector.broadcast %11 : vector<1x64xf32> to vector<8x64xf32>
    %13 = arith.addf %10, %12 : vector<8x64xf32>
    %14 = math.tanh %13 : vector<8x64xf32>
    %15 = arith.truncf %14 : vector<8x64xf32> to vector<8x64xbf16>
    %c0_10 = arith.constant 0 : index
    %c0_11 = arith.constant 0 : index
    %16 = vector.load %arg6[%c0_10, %c0_11] : memref<64x4xbf16, #tpu.memory_space<vmem>>, vector<64x4xbf16>
    %cst_12 = arith.constant dense<0.000000e+00> : vector<8x4xf32>
    %17 = tpu.matmul %15, %16, %cst_12 {dimension_numbers = #tpu.dot_dimension_numbers<[1], [0], [0], [1], [0, 0, 1, 1], [], []>} : vector<8x64xbf16>, vector<64x4xbf16>, vector<8x4xf32> -> vector<8x4xf32>
    %c0_13 = arith.constant 0 : index
    %c0_14 = arith.constant 0 : index
    %18 = vector.load %arg7[%c0_13, %c0_14] : memref<1x4xf32, #tpu.memory_space<vmem>>, vector<1x4xf32>
    %19 = vector.broadcast %18 : vector<1x4xf32> to vector<8x4xf32>
    %20 = arith.addf %17, %19 : vector<8x4xf32>
    %c0_15 = arith.constant 0 : index
    %c0_16 = arith.constant 0 : index
    %21 = vector.load %arg8[%c0_15, %c0_16] : memref<8x4xf32, #tpu.memory_space<vmem>>, vector<8x4xf32>
    tpu.vector_store %arg8[%c0_15, %c0_16], %20 {strides = array<i32>} : memref<8x4xf32, #tpu.memory_space<vmem>>, vector<8x4xf32>,
    return
  }
  func.func @transform_0(%arg0: i32) -> (i32, i32) {
    %c0_i32 = arith.constant 0 : i32
    %c0_i32_0 = arith.constant 0 : i32
    return %arg0, %c0_i32 : i32, i32
  }
  func.func @transform_1(%arg0: i32) -> (i32, i32) {
    %c0_i32 = arith.constant 0 : i32
    %c0_i32_0 = arith.constant 0 : i32
    %c0_i32_1 = arith.constant 0 : i32
    return %c0_i32, %c0_i32_0 : i32, i32
  }
  func.func @transform_2(%arg0: i32) -> (i32, i32) {
    %c0_i32 = arith.constant 0 : i32
    %c0_i32_0 = arith.constant 0 : i32
    %c0_i32_1 = arith.constant 0 : i32
    return %c0_i32, %c0_i32_0 : i32, i32
  }
  func.func @transform_3(%arg0: i32) -> (i32, i32) {
    %c0_i32 = arith.constant 0 : i32
    %c0_i32_0 = arith.constant 0 : i32
    %c0_i32_1 = arith.constant 0 : i32
    return %c0_i32, %c0_i32_0 : i32, i32
  }
  func.func @transform_4(%arg0: i32) -> (i32, i32) {
    %c0_i32 = arith.constant 0 : i32
    %c0_i32_0 = arith.constant 0 : i32
    %c0_i32_1 = arith.constant 0 : i32
    return %c0_i32, %c0_i32_0 : i32, i32
  }
  func.func @transform_5(%arg0: i32) -> (i32, i32) {
    %c0_i32 = arith.constant 0 : i32
    %c0_i32_0 = arith.constant 0 : i32
    %c0_i32_1 = arith.constant 0 : i32
    return %c0_i32, %c0_i32_0 : i32, i32
  }
  func.func @transform_6(%arg0: i32) -> (i32, i32) {
    %c0_i32 = arith.constant 0 : i32
    %c0_i32_0 = arith.constant 0 : i32
    %c0_i32_1 = arith.constant 0 : i32
    return %c0_i32, %c0_i32_0 : i32, i32
  }
  func.func @transform_7(%arg0: i32) -> (i32, i32) {
    %c0_i32 = arith.constant 0 : i32
    %c0_i32_0 = arith.constant 0 : i32
    return %arg0, %c0_i32 : i32, i32
  }
}

</mosaic_0001>

<llo_original>
// kernel: actor_critic_forward.1
$region0: #{actor_critic_forward.1}
  #allocation0 [shape = 'u32[]', space=smem, size = 0x4, offset = 0x4, fixed_abs, tag = 'smem constant byte address 0x4 - core index']
  #allocation1 [shape = 'u32[144,128]{1,0:T(1,128)}', space=vmem, size = 0x12000, scoped, tag = 'internal scratch']
  %s0 = inlined_call_operand.vmem [shape: f32[8,32], index: 0, kind: input, shape index: {}]
  %s1 = inlined_call_operand.hbm [shape: bf16[32,64], index: 1, kind: input, shape index: {}]
  %s2 = inlined_call_operand.vmem [shape: f32[1,64], index: 2, kind: input, shape index: {}]
  %s3 = inlined_call_operand.vmem [shape: bf16[64,64], index: 3, kind: input, shape index: {}]
  %s4 = inlined_call_operand.vmem [shape: f32[1,64], index: 4, kind: input, shape index: {}]
  %s5 = inlined_call_operand.vmem [shape: bf16[64,4], index: 5, kind: input, shape index: {}]
  %s6 = inlined_call_operand.vmem [shape: f32[1,4], index: 6, kind: input, shape index: {}]
  %s7 = inlined_call_operand.vmem [shape: f32[8,4], index: 7, kind: output, shape index: {}]
  %s8 = sld [smem:[#allocation0]]
  $region42: #{actor_critic_forward.1} parent=0
    _
  %s10 = ssub.s32 1, %s8
  %s11 = scalar_select 0, %s10, %s8
  $region1: #{actor_critic_forward.1} parent=0
    #allocation2 [shape = 'u8[8192]{0}', space=vmem, size = 0x2000, scoped, tag = 'input window, operand 1, single buffered']
    #allocation3 [shape = 's32[1]{0}', space=sflag, size = 0x4, scoped, tag = 'scoped memory for actor_critic_forward.1']
    %12 = vsyncpa [#allocation3], 0
    // Predicated region
    $region2: #{actor_critic_forward.1} parent=1 // pred_check
      _
    $region3: #{actor_critic_forward.1} parent=1 // pred_check_branch
      %14 = sbr.rel (0) target = $region5
    $region4: #{actor_critic_forward.1} parent=1 // pred_region
      _
    $region5: #{actor_critic_forward.1} parent=1 // pred_fallthru
      _
    // Predicated region
    $region6: #{actor_critic_forward.1} parent=1 // pred_check
      _
    $region7: #{actor_critic_forward.1} parent=1 // pred_check_branch
      %16 = sbr.rel (0) target = $region9
    $region8: #{actor_critic_forward.1} parent=1 // pred_region
      %s18 = ssub.s32 256, 256
      %19 = vsyncadd [#allocation3], %s18
      %s20 = sshll.u32 [#allocation2], 4
      %s21 = int_to_ptr.vmem [resolvable:$true] %s20
      %26 = dma.hbm_to_vmem [thread:$0]  %s1, 256, %s21, [#allocation3], 64, 64, 4
    $region9: #{actor_critic_forward.1} parent=1 // pred_fallthru
      _
    // Predicated region
    $region10: #{actor_critic_forward.1} parent=1 // pred_check
      _
    $region11: #{actor_critic_forward.1} parent=1 // pred_check_branch
      %28 = sbr.rel (0) target = $region13
    $region12: #{actor_critic_forward.1} parent=1 // pred_region
      _
    $region13: #{actor_critic_forward.1} parent=1 // pred_fallthru
      _
    // Predicated region
    $region14: #{actor_critic_forward.1} parent=1 // pred_check
      _
    $region15: #{actor_critic_forward.1} parent=1 // pred_check_branch
      %30 = sbr.rel (0) target = $region17
    $region16: #{actor_critic_forward.1} parent=1 // pred_region
      _
    $region17: #{actor_critic_forward.1} parent=1 // pred_fallthru
      _
    // Predicated region
    $region18: #{actor_critic_forward.1} parent=1 // pred_check
      _
    $region19: #{actor_critic_forward.1} parent=1 // pred_check_branch
      %32 = sbr.rel (0) target = $region21
    $region20: #{actor_critic_forward.1} parent=1 // pred_region
      _
    $region21: #{actor_critic_forward.1} parent=1 // pred_fallthru
      _
    // Predicated region
    $region22: #{actor_critic_forward.1} parent=1 // pred_check
      _
    $region23: #{actor_critic_forward.1} parent=1 // pred_check_branch
      %34 = sbr.rel (0) target = $region25
    $region24: #{actor_critic_forward.1} parent=1 // pred_region
      _
    $region25: #{actor_critic_forward.1} parent=1 // pred_fallthru
      _
    // Predicated region
    $region26: #{actor_critic_forward.1} parent=1 // pred_check
      _
    $region27: #{actor_critic_forward.1} parent=1 // pred_check_branch
      %36 = sbr.rel (0) target = $region29
    $region28: #{actor_critic_forward.1} parent=1 // pred_region
      _
    $region29: #{actor_critic_forward.1} parent=1 // pred_fallthru
      _
    // Predicated region
    $region30: #{actor_critic_forward.1} parent=1 // pred_check
      _
    $region31: #{actor_critic_forward.1} parent=1 // pred_check_branch
      %38 = sbr.rel (0) target = $region33
    $region32: #{actor_critic_forward.1} parent=1 // pred_region
      %39 = dma.done [#allocation3], 256
    $region33: #{actor_critic_forward.1} parent=1 // pred_fallthru
      _
    %v41 = vld [vmem:[%s0] sm:$0xff]
    %v42 = vpack.c.bf16 %v41, %v41
    %v43 = vld [vmem:[#allocation2] sm:$0xf]
    %v44 = vld [vmem:[#allocation2 + $0x4] sm:$0xf]
    %v45 = vld [vmem:[#allocation2 + $0x8] sm:$0xf]
    %v46 = vld [vmem:[#allocation2 + $0xc] sm:$0xf]
    %v47 = vld [vmem:[%s2] sm:$0x1]
    %v49 = vlaneseq
    %v50 = vshrl.u32 %v49, 7
    %v51 = vsub.s32 0, %v50
    %v52 = vrot.slane %v47, %v51
    %v58 = vunpack.c.l.b16 %v43
    %v59 = vunpack.c.l.b16 %v44
    %v60 = vunpack.c.l.b16 %v45
    %v61 = vunpack.c.l.b16 %v46
    %v62 = vpack.c.b16 %v59, %v58
    %v63 = vpack.c.b16 %v61, %v60
    %vm66 = vcmask 261120
    %v68 = vsel %vm66, %v42, 0
    %70 = vmatprep.subr.bf16.mxu0 0
    %71 = vmatpush1.bf16.msra.mxu0 %v62
    %72 = vmatprep.subr.bf16.mxu0 0
    %73 = vmatpush1.bf16.msra.mxu0 %v63
    %74 = vmatprep.subr.bf16.mxu0 0
    %75 = vmatpush1.bf16.msra.mxu0 0
    %76 = vmatprep.subr.bf16.mxu0 0
    %77 = vmatpush1.bf16.msra.mxu0 0
    %78 = vmatprep.subr.bf16.mxu0 0
    %79 = vmatpush1.bf16.msra.mxu0 0
    %80 = vmatprep.subr.bf16.mxu0 0
    %81 = vmatpush1.bf16.msra.mxu0 0
    %82 = vmatprep.subr.bf16.mxu0 0
    %83 = vmatpush1.bf16.msra.mxu0 0
    %84 = vmatprep.subr.bf16.mxu0 0
    %85 = vmatpush1.bf16.msra.mxu0 0
    %86 = vmatprep.subr.bf16.mxu0 0
    %87 = vmatpush1.bf16.msra.mxu0 0
    %88 = vmatprep.subr.bf16.mxu0 0
    %89 = vmatpush1.bf16.msra.mxu0 0
    %90 = vmatprep.subr.bf16.mxu0 0
    %91 = vmatpush1.bf16.msra.mxu0 0
    %92 = vmatprep.subr.bf16.mxu0 0
    %93 = vmatpush1.bf16.msra.mxu0 0
    %94 = vmatprep.subr.bf16.mxu0 0
    %95 = vmatpush1.bf16.msra.mxu0 0
    %96 = vmatprep.subr.bf16.mxu0 0
    %97 = vmatpush1.bf16.msra.mxu0 0
    %98 = vmatprep.subr.bf16.mxu0 0
    %99 = vmatpush1.bf16.msra.mxu0 0
    %100 = vmatprep.subr.bf16.mxu0 0
    %101 = vmatpush1.bf16.msra.mxu0 0
    %102 = vmatprep.mubr.bf16.mxu0 0
    %103 = vmatmul.mubr.bf16.gmra.mrb[0].mxu0 %v68
    %v104 = vpop.f32.mrb[0].mxu0
    %v105 = vadd.f32 %v52, %v104
    %v106 = vpop.f32.mrb[0].mxu0
    %v107 = vpop.f32.mrb[0].mxu0
    %v108 = vpop.f32.mrb[0].mxu0
    %109 = vdwg.mxu0
    %v110 = vtanh.pop %v105
    %v111 = vpack.c.bf16 %v110, %v110
    %v112 = vld [vmem:[%s3] sm:$0xf]
    %v113 = vld [vmem:[%s3 + $0x4] sm:$0xf]
    %v114 = vld [vmem:[%s3 + $0x8] sm:$0xf]
    %v115 = vld [vmem:[%s3 + $0xc] sm:$0xf]
    %v116 = vld [vmem:[%s3 + $0x10] sm:$0xf]
    %v117 = vld [vmem:[%s3 + $0x14] sm:$0xf]
    %v118 = vld [vmem:[%s3 + $0x18] sm:$0xf]
    %v119 = vld [vmem:[%s3 + $0x1c] sm:$0xf]
    %v120 = vld [vmem:[%s4] sm:$0x1]
    %v122 = vlaneseq
    %v123 = vshrl.u32 %v122, 7
    %v124 = vsub.s32 0, %v123
    %v125 = vrot.slane %v120, %v124
    %v135 = vunpack.c.l.b16 %v112
    %v136 = vunpack.c.l.b16 %v113
    %v137 = vunpack.c.l.b16 %v114
    %v138 = vunpack.c.l.b16 %v115
    %v139 = vunpack.c.l.b16 %v116
    %v140 = vunpack.c.l.b16 %v117
    %v141 = vunpack.c.l.b16 %v118
    %v142 = vunpack.c.l.b16 %v119
    %v143 = vpack.c.b16 %v136, %v135
    %v144 = vpack.c.b16 %v138, %v137
    %v145 = vpack.c.b16 %v140, %v139
    %v146 = vpack.c.b16 %v142, %v141
    %vm151 = vcmask 523264
    %v153 = vsel %vm151, %v111, 0
    %155 = vmatprep.subr.bf16.mxu0 0
    %156 = vmatpush1.bf16.msra.mxu0 %v143
    %157 = vmatprep.subr.bf16.mxu0 0
    %158 = vmatpush1.bf16.msra.mxu0 %v144
    %159 = vmatprep.subr.bf16.mxu0 0
    %160 = vmatpush1.bf16.msra.mxu0 %v145
    %161 = vmatprep.subr.bf16.mxu0 0
    %162 = vmatpush1.bf16.msra.mxu0 %v146
    %163 = vmatprep.subr.bf16.mxu0 0
    %164 = vmatpush1.bf16.msra.mxu0 0
    %165 = vmatprep.subr.bf16.mxu0 0
    %166 = vmatpush1.bf16.msra.mxu0 0
    %167 = vmatprep.subr.bf16.mxu0 0
    %168 = vmatpush1.bf16.msra.mxu0 0
    %169 = vmatprep.subr.bf16.mxu0 0
    %170 = vmatpush1.bf16.msra.mxu0 0
    %171 = vmatprep.subr.bf16.mxu0 0
    %172 = vmatpush1.bf16.msra.mxu0 0
    %173 = vmatprep.subr.bf16.mxu0 0
    %174 = vmatpush1.bf16.msra.mxu0 0
    %175 = vmatprep.subr.bf16.mxu0 0
    %176 = vmatpush1.bf16.msra.mxu0 0
    %177 = vmatprep.subr.bf16.mxu0 0
    %178 = vmatpush1.bf16.msra.mxu0 0
    %179 = vmatprep.subr.bf16.mxu0 0
    %180 = vmatpush1.bf16.msra.mxu0 0
    %181 = vmatprep.subr.bf16.mxu0 0
    %182 = vmatpush1.bf16.msra.mxu0 0
    %183 = vmatprep.subr.bf16.mxu0 0
    %184 = vmatpush1.bf16.msra.mxu0 0
    %185 = vmatprep.subr.bf16.mxu0 0
    %186 = vmatpush1.bf16.msra.mxu0 0
    %187 = vmatprep.mubr.bf16.mxu0 0
    %188 = vmatmul.mubr.bf16.gmra.mrb[0].mxu0 %v153
    %v189 = vpop.f32.mrb[0].mxu0
    %v190 = vadd.f32 %v125, %v189
    %v191 = vpop.f32.mrb[0].mxu0
    %v192 = vpop.f32.mrb[0].mxu0
    %v193 = vpop.f32.mrb[0].mxu0
    %194 = vdwg.mxu0
    %v195 = vtanh.pop %v190
    %v196 = vpack.c.bf16 %v195, %v195
    %v197 = vld [vmem:[%s5] sm:$0xf]
    %v198 = vld [vmem:[%s5 + $0x4] sm:$0xf]
    %v199 = vld [vmem:[%s5 + $0x8] sm:$0xf]
    %v200 = vld [vmem:[%s5 + $0xc] sm:$0xf]
    %v201 = vld [vmem:[%s5 + $0x10] sm:$0xf]
    %v202 = vld [vmem:[%s5 + $0x14] sm:$0xf]
    %v203 = vld [vmem:[%s5 + $0x18] sm:$0xf]
    %v204 = vld [vmem:[%s5 + $0x1c] sm:$0xf]
    %v205 = vld [vmem:[%s6] sm:$0x1]
    %v207 = vlaneseq
    %v208 = vshrl.u32 %v207, 7
    %v209 = vsub.s32 0, %v208
    %v210 = vrot.slane %v205, %v209
    %v220 = vunpack.c.l.b16 %v197
    %v221 = vunpack.c.l.b16 %v198
    %v222 = vunpack.c.l.b16 %v199
    %v223 = vunpack.c.l.b16 %v200
    %v224 = vunpack.c.l.b16 %v201
    %v225 = vunpack.c.l.b16 %v202
    %v226 = vunpack.c.l.b16 %v203
    %v227 = vunpack.c.l.b16 %v204
    %v228 = vpack.c.b16 %v221, %v220
    %v229 = vpack.c.b16 %v223, %v222
    %v230 = vpack.c.b16 %v225, %v224
    %v231 = vpack.c.b16 %v227, %v226
    %v237 = vsel %vm151, %v196, 0
    %239 = vmatprep.subr.bf16.mxu0 0
    %240 = vmatpush1.bf16.msra.mxu0 %v228
    %241 = vmatprep.subr.bf16.mxu0 0
    %242 = vmatpush1.bf16.msra.mxu0 %v229
    %243 = vmatprep.subr.bf16.mxu0 0
    %244 = vmatpush1.bf16.msra.mxu0 %v230
    %245 = vmatprep.subr.bf16.mxu0 0
    %246 = vmatpush1.bf16.msra.mxu0 %v231
    %247 = vmatprep.subr.bf16.mxu0 0
    %248 = vmatpush1.bf16.msra.mxu0 0
    %249 = vmatprep.subr.bf16.mxu0 0
    %250 = vmatpush1.bf16.msra.mxu0 0
    %251 = vmatprep.subr.bf16.mxu0 0
    %252 = vmatpush1.bf16.msra.mxu0 0
    %253 = vmatprep.subr.bf16.mxu0 0
    %254 = vmatpush1.bf16.msra.mxu0 0
    %255 = vmatprep.subr.bf16.mxu0 0
    %256 = vmatpush1.bf16.msra.mxu0 0
    %257 = vmatprep.subr.bf16.mxu0 0
    %258 = vmatpush1.bf16.msra.mxu0 0
    %259 = vmatprep.subr.bf16.mxu0 0
    %260 = vmatpush1.bf16.msra.mxu0 0
    %261 = vmatprep.subr.bf16.mxu0 0
    %262 = vmatpush1.bf16.msra.mxu0 0
    %263 = vmatprep.subr.bf16.mxu0 0
    %264 = vmatpush1.bf16.msra.mxu0 0
    %265 = vmatprep.subr.bf16.mxu0 0
    %266 = vmatpush1.bf16.msra.mxu0 0
    %267 = vmatprep.subr.bf16.mxu0 0
    %268 = vmatpush1.bf16.msra.mxu0 0
    %269 = vmatprep.subr.bf16.mxu0 0
    %270 = vmatpush1.bf16.msra.mxu0 0
    %271 = vmatprep.mubr.bf16.mxu0 0
    %272 = vmatmul.mubr.bf16.gmra.mrb[0].mxu0 %v237
    %v273 = vpop.f32.mrb[0].mxu0
    %v274 = vadd.f32 %v210, %v273
    %v275 = vpop.f32.mrb[0].mxu0
    %v276 = vpop.f32.mrb[0].mxu0
    %v277 = vpop.f32.mrb[0].mxu0
    %278 = vdwg.mxu0
    %vm279 = vcmask 31744
    %280 = vst.msk [vmem:[%s7] sm:$0xff] %vm279, %v274
    // Predicated region
    $region34: #{actor_critic_forward.1} parent=1 // pred_check
      _
    $region35: #{actor_critic_forward.1} parent=1 // pred_check_branch
      %282 = sbr.rel (0) target = $region37
    $region36: #{actor_critic_forward.1} parent=1 // pred_region
      _
    $region37: #{actor_critic_forward.1} parent=1 // pred_fallthru
      _
    // Predicated region
    $region38: #{actor_critic_forward.1} parent=1 // pred_check
      _
    $region39: #{actor_critic_forward.1} parent=1 // pred_check_branch
      %284 = sbr.rel (0) target = $region41
    $region40: #{actor_critic_forward.1} parent=1 // pred_region
      _
    $region41: #{actor_critic_forward.1} parent=1 // pred_fallthru
      _
    %285 = vsyncpa [#allocation3], 1

</llo_original>
